<compile_context>
chip_gen: v7x
topology: tpu7x:2x2x1
jax: 0.10.0
libtpu: 0.0.40
codegen_flags: <defaults>
</compile_context>

<pallas_src>
import numpy as np
import jax
import jax.numpy as jnp
from jax.experimental import pallas as pl
from jax.experimental.pallas import tpu as pltpu

G_MIN = 0.99
G_MAX = 1.0
LANE = 128  # TPU lane width; output last dim padded to a multiple of this.


def _map_gamma_compressed_kernel(x_ref, delays_ref, out_ref):
    # x_ref:      SMEM (P,) f32 -- scalar path, only element 0 used (torch x[0])
    # delays_ref: VMEM (1, Np) f32, Np multiple of 128 (lane-dense)
    # out_ref:    VMEM (1, Np) f32
    x0 = x_ref[0]
    g = jax.nn.sigmoid(x0) * (G_MAX - G_MIN) + G_MIN
    # g in (g_min, g_max) subset of (0, 1): g ** d == exp(d * log(g)).
    # log(g) is a single hoisted scalar; per-lane work is one mul + one exp.
    # With d up to ~2000, d*log(g) in (-20, 0] -- well inside f32 exp range.
    out_ref[...] = jnp.exp(delays_ref[...] * jnp.log(g))


def _map_gamma_raw_kernel(x_ref, delays_ref, out_ref):
    x0 = x_ref[0]
    # Keep jnp.power: x0 may be <= 0 in the uncompressed path, and
    # pow(negative, integer-valued float delay) must stay finite to match the
    # PyTorch reference (an exp(d*log(x0)) rewrite would produce NaN there).
    out_ref[...] = jnp.power(x0, delays_ref[...])


def make_map_gamma(delays, is_compressed=True):
    """Build the map_gamma forward for a fixed `delays` configuration.

    The lane-dense padded delays row is prepared once here (mirroring the
    torch module's __init__), so each forward call does only:
      scalar SMEM read of x + one aligned (1, k*128) VMEM tile in/out.
    """
    delays_np = np.asarray(delays, np.float32)
    out_shape = delays_np.shape
    n = delays_np.size
    n_pad = max(LANE, ((n + LANE - 1) // LANE) * LANE)
    delays_padded = np.zeros((1, n_pad), np.float32)
    delays_padded[0, :n] = delays_np.reshape(-1)
    delays_dev = jnp.asarray(delays_padded)  # fixed config; uploaded once

    kernel = _map_gamma_compressed_kernel if is_compressed else _map_gamma_raw_kernel

    call = pl.pallas_call(
        kernel,
        out_shape=jax.ShapeDtypeStruct((1, n_pad), jnp.float32),
        in_specs=[
            pl.BlockSpec(memory_space=pltpu.MemorySpace.SMEM),  # x: scalar path
            pl.BlockSpec((1, n_pad), lambda: (0, 0)),           # delays: one lane-dense tile
        ],
        out_specs=pl.BlockSpec((1, n_pad), lambda: (0, 0)),
    )

    @jax.jit
    def forward(x):
        x1d = jnp.asarray(x, jnp.float32).reshape(-1)
        out = call(x1d, delays_dev)
        return out[0, :n].reshape(out_shape)

    return forward


def map_gamma(x, delays, is_compressed=True):
    """One-shot convenience wrapper (prefer make_map_gamma for repeated calls)."""
    return make_map_gamma(delays, is_compressed)(x)


def _reference(x, delays, is_compressed=True):
    x = jnp.asarray(x, jnp.float32)
    d = jnp.asarray(delays, jnp.float32)
    if is_compressed:
        return (jax.nn.sigmoid(x[0]) * (G_MAX - G_MIN) + G_MIN) ** d
    return x[0] ** d


if __name__ == "__main__":
    key = jax.random.PRNGKey(0)
    # Small deterministic inputs consistent with the module:
    #   x: learnable parameter vector (only x[0] used)
    #   delays: 8 typical FDN delay-line lengths (in samples)
    x = jax.random.normal(key, (2,), dtype=jnp.float32)
    delays = jnp.array([593., 743., 929., 1153., 1399., 1699., 1867., 2029.],
                       dtype=jnp.float32)

    # Compressed (default) branch.
    fwd = make_map_gamma(delays, is_compressed=True)
    out = jax.block_until_ready(fwd(x))
    ref = _reference(x, delays, is_compressed=True)
    assert out.shape == ref.shape
    assert jnp.allclose(out, ref, rtol=1e-5, atol=1e-6), (out, ref)

    # Uncompressed branch (positive base, as in a typical gain setting).
    x_pos = jnp.array([0.995, 0.0], dtype=jnp.float32)
    fwd_raw = make_map_gamma(delays, is_compressed=False)
    out_raw = jax.block_until_ready(fwd_raw(x_pos))
    ref_raw = _reference(x_pos, delays, is_compressed=False)
    assert jnp.allclose(out_raw, ref_raw, rtol=1e-5, atol=1e-6), (out_raw, ref_raw)

    print("KERNEL_OK")
</pallas_src>

<mosaic_0001>
module attributes {stable_mosaic.version = 11 : i64} {
  func.func @_map_gamma_compressed_kernel(%arg0: memref<2xf32, #tpu.memory_space<smem>>, %arg1: memref<1x128xf32, #tpu.memory_space<vmem>>, %arg2: memref<1x128xf32, #tpu.memory_space<vmem>>) attributes {dimension_semantics = [], scalar_prefetch = 0 : i64, scratch_operands = 0 : i64, tpu.core_type = #tpu.core_type<tc>} {
    %c0 = arith.constant 0 : index
    %0 = memref.load %arg0[%c0] : memref<2xf32, #tpu.memory_space<smem>>
    %1 = arith.negf %0 : f32
    %2 = math.exp %1 : f32
    %cst = arith.constant 1.000000e+00 : f32
    %3 = arith.addf %cst, %2 : f32
    %4 = arith.divf %cst, %3 : f32
    %cst_0 = arith.constant 0.00999999977 : f32
    %5 = arith.mulf %4, %cst_0 : f32
    %cst_1 = arith.constant 9.900000e-01 : f32
    %6 = arith.addf %5, %cst_1 : f32
    %c0_2 = arith.constant 0 : index
    %c0_3 = arith.constant 0 : index
    %7 = vector.load %arg1[%c0_2, %c0_3] : memref<1x128xf32, #tpu.memory_space<vmem>>, vector<1x128xf32>
    %8 = math.log %6 : f32
    %9 = vector.broadcast %8 : f32 to vector<1x128xf32>
    %10 = arith.mulf %7, %9 : vector<1x128xf32>
    %11 = math.exp %10 : vector<1x128xf32>
    %c0_4 = arith.constant 0 : index
    %c0_5 = arith.constant 0 : index
    %12 = vector.load %arg2[%c0_4, %c0_5] : memref<1x128xf32, #tpu.memory_space<vmem>>, vector<1x128xf32>
    tpu.vector_store %arg2[%c0_4, %c0_5], %11 {strides = array<i32>} : memref<1x128xf32, #tpu.memory_space<vmem>>, vector<1x128xf32>,
    return
  }
}

</mosaic_0001>

<llo_original>
// kernel: forward.1
$region0: #{forward.1}
  #allocation0 [shape = 'u32[]', space=smem, size = 0x4, offset = 0x4, fixed_abs, tag = 'smem constant byte address 0x4 - core index']
  #allocation1 [shape = 'u32[144,128]{1,0:T(1,128)}', space=vmem, size = 0x12000, scoped, tag = 'internal scratch']
  %s0 = inlined_call_operand.hbm [shape: f32[2], index: 0, kind: input, shape index: {}]
  %s1 = inlined_call_operand.vmem [shape: f32[1,128], index: 1, kind: input, shape index: {}]
  %s2 = inlined_call_operand.vmem [shape: f32[1,128], index: 2, kind: output, shape index: {}]
  %s3 = sld [smem:[#allocation0]]
  $region22: #{forward.1} parent=0
    _
  %s5 = ssub.s32 1, %s3
  %s6 = scalar_select 0, %s5, %s3
  $region1: #{forward.1} parent=0
    #allocation2 [shape = 'u8[512]{0}', space=smem, size = 0x200, scoped, tag = 'input window, operand 0, single buffered']
    #allocation3 [shape = 's32[1]{0}', space=sflag, size = 0x4, scoped, tag = 'scoped memory for forward.1']
    %7 = vsyncpa [#allocation3], 0
    // Predicated region
    $region2: #{forward.1} parent=1 // pred_check
      _
    $region3: #{forward.1} parent=1 // pred_check_branch
      %9 = sbr.rel (0) target = $region5
    $region4: #{forward.1} parent=1 // pred_region
      %s11 = ssub.s32 16, 16
      %12 = vsyncadd [#allocation3], %s11
      %15 = dma.hbm_to_smem %s0, 16, [#allocation2], [#allocation3]
    $region5: #{forward.1} parent=1 // pred_fallthru
      _
    // Predicated region
    $region6: #{forward.1} parent=1 // pred_check
      _
    $region7: #{forward.1} parent=1 // pred_check_branch
      %17 = sbr.rel (0) target = $region9
    $region8: #{forward.1} parent=1 // pred_region
      _
    $region9: #{forward.1} parent=1 // pred_fallthru
      _
    // Predicated region
    $region10: #{forward.1} parent=1 // pred_check
      _
    $region11: #{forward.1} parent=1 // pred_check_branch
      %19 = sbr.rel (0) target = $region13
    $region12: #{forward.1} parent=1 // pred_region
      %20 = dma.done [#allocation3], 16
    $region13: #{forward.1} parent=1 // pred_fallthru
      _
    %21 = sfence
    %s22 = sld [smem:[#allocation2]]
    %s23 = sxor.u32 %s22, 2147483648
    %v24 = vstv %s23
    %v25 = vmul.f32 %v24, 1.442695
    %v26 = vpow.pop %v25
    %s27 = vtos %v26
    %s28 = sadd.f32 %s27, 1.0
    %v29 = vstv %s28
    %v30 = vrcp.pop %v29
    %s31 = vtos %v30
    %s32 = smul.f32 %s31, 0.01
    %s33 = sadd.f32 %s32, 0.99
    %v34 = vld [vmem:[%s1] sm:$0x1]
    %v35 = vstv %s33
    %v36 = vlog2.pop %v35
    %v37 = vmul.f32 %v36, 0.6931472
    %s38 = vtos %v37
    %v39 = vstv %s38
    %v40 = vmul.f32 %v34, %v39
    %v41 = vmul.f32 %v40, 1.442695
    %v42 = vpow.pop %v41
    %43 = vst [vmem:[%s2] sm:$0x1] %v42
    // Predicated region
    $region14: #{forward.1} parent=1 // pred_check
      _
    $region15: #{forward.1} parent=1 // pred_check_branch
      %45 = sbr.rel (0) target = $region17
    $region16: #{forward.1} parent=1 // pred_region
      _
    $region17: #{forward.1} parent=1 // pred_fallthru
      _
    // Predicated region
    $region18: #{forward.1} parent=1 // pred_check
      _
    $region19: #{forward.1} parent=1 // pred_check_branch
      %47 = sbr.rel (0) target = $region21
    $region20: #{forward.1} parent=1 // pred_region
      _
    $region21: #{forward.1} parent=1 // pred_fallthru
      _
    %48 = vsyncpa [#allocation3], 1

</llo_original>
